<compile_context>
chip_gen: v6e
topology: v6e:2x2x1
jax: 0.10.0
libtpu: 0.0.40
codegen_flags: <defaults>
</compile_context>

<pallas_src>
import jax
import jax.numpy as jnp
from jax.experimental import pallas as pl
from jax.experimental.pallas import tpu as pltpu

LANES = 128        # vreg lane width -> lane-dense last dim
ROW_TILE = 4096    # 4096 x 128 f32 = 2 MiB / buffer; bump to 8192 on v7x if desired


def linear_kernel(w_ref, b_ref, x_ref, o_ref):
    # w_ref, b_ref are (1, 1) f32 SMEM scalars; x_ref / o_ref are
    # (tr, 128) VMEM tiles.  One VPU FMA, fully hidden under the HBM DMA.
    # TODO(synk): for bf16 I/O on v6e/v7x, compute natively in bf16 (skip the
    # f32 upcast); kept f32 here since the reference dtype is f32 and v5e has
    # no bf16 VALU.
    w = w_ref[0, 0]
    b = b_ref[0, 0]
    o_ref[...] = (x_ref[...].astype(jnp.float32) * w + b).astype(o_ref.dtype)


def linear_forward(x, w, b, *, row_tile=ROW_TILE):
    """x: (N, 1), w: (1, 1), b: (1,)  ->  (N, 1) with x's dtype."""
    n = x.shape[0]
    dtype = x.dtype
    itemsize = jnp.dtype(dtype).itemsize

    # Parameters as (1, 1) f32 SMEM scalars (broadcast inside the kernel).
    w2 = w.reshape(1, 1).astype(jnp.float32)
    b2 = b.reshape(1, 1).astype(jnp.float32)

    # --- layout plumbing: (N, 1) column -> lane-dense (rows, 128) slab ---
    rows = pl.cdiv(n, LANES)
    exact = (n % LANES == 0)

    x_flat = x.reshape(-1)
    if not exact:
        # Only the <128-element lane remainder is padded (cheap, one small op).
        x_flat = jnp.pad(x_flat, (0, rows * LANES - n))
    x2d = x_flat.reshape(rows, LANES)

    # Row tile: full extent if it fits, otherwise a multiple of 8 (the (8,128)
    # block-shape rule) so Mosaic lowering never trips on custom row_tile.
    tr = min(row_tile, rows)
    if tr < rows:
        tr = max(8, (tr // 8) * 8)

    grid = (pl.cdiv(rows, tr),)   # last block may overhang; writes are masked

    y2d = pl.pallas_call(
        linear_kernel,
        out_shape=jax.ShapeDtypeStruct((rows, LANES), dtype),
        grid_spec=pl.GridSpec(
            grid=grid,
            in_specs=[
                pl.BlockSpec(memory_space=pltpu.SMEM),          # weight scalar
                pl.BlockSpec(memory_space=pltpu.SMEM),          # bias scalar
                pl.BlockSpec((tr, LANES), lambda i: (i, 0)),    # x row tile
            ],
            out_specs=pl.BlockSpec((tr, LANES), lambda i: (i, 0)),
        ),
        compiler_params=pltpu.CompilerParams(
            dimension_semantics=("parallel",),   # shard rows across TCs (v7x)
            vmem_limit_bytes=32 << 20,           # headroom for large tiles on all gens
        ),
        cost_estimate=pl.CostEstimate(
            flops=2 * n,
            transcendentals=0,
            bytes_accessed=2 * n * itemsize,
        ),
    )(w2, b2, x2d)

    # Fast path: no slice when N is already a multiple of 128.
    if exact:
        return y2d.reshape(n, 1)
    return y2d.reshape(-1)[:n].reshape(n, 1)


if __name__ == "__main__":
    key = jax.random.PRNGKey(0)
    kx, kw, kb = jax.random.split(key, 3)

    # Small shapes consistent with Linear(1, 1): batch of 8 scalar samples.
    # TODO(synk): for batches this tiny the op is launch-overhead dominated;
    # plain XLA fusion of x*w+b is cheaper — the kernel pays off at large N.
    x = jax.random.normal(kx, (8, 1), dtype=jnp.float32)
    w = jax.random.uniform(kw, (1, 1), minval=-1.0, maxval=1.0, dtype=jnp.float32)
    b = jax.random.uniform(kb, (1,), minval=-1.0, maxval=1.0, dtype=jnp.float32)

    y = linear_forward(x, w, b)
    jax.block_until_ready(y)

    # Reference check in plain JAX.
    y_ref = x @ w.T + b
    assert y.shape == (8, 1)
    assert jnp.allclose(y, y_ref, atol=1e-6), "mismatch vs reference"

    print("KERNEL_OK")
</pallas_src>

<mosaic_0001>
module attributes {stable_mosaic.version = 11 : i64} {
  func.func @linear_kernel(%arg0: i32, %arg1: memref<1x1xf32, #tpu.memory_space<smem>>, %arg2: memref<1x1xf32, #tpu.memory_space<smem>>, %arg3: memref<1x128xf32, #tpu.memory_space<vmem>>, %arg4: memref<1x128xf32, #tpu.memory_space<vmem>>) attributes {dimension_semantics = [#tpu.dimension_semantics<parallel>], iteration_bounds = array<i64: 1>, scalar_prefetch = 0 : i64, scratch_operands = 0 : i64, tpu.core_type = #tpu.core_type<tc>, window_params = [{transform_indices = @transform_0, window_bounds = array<i64: 1, 1>}, {transform_indices = @transform_1, window_bounds = array<i64: 1, 1>}, {transform_indices = @transform_2, window_bounds = array<i64: 1, 128>}, {transform_indices = @transform_3, window_bounds = array<i64: 1, 128>}]} {
    %c0 = arith.constant 0 : index
    %c0_0 = arith.constant 0 : index
    %0 = memref.load %arg1[%c0, %c0_0] : memref<1x1xf32, #tpu.memory_space<smem>>
    %c0_1 = arith.constant 0 : index
    %c0_2 = arith.constant 0 : index
    %1 = memref.load %arg2[%c0_1, %c0_2] : memref<1x1xf32, #tpu.memory_space<smem>>
    %c0_3 = arith.constant 0 : index
    %c0_4 = arith.constant 0 : index
    %2 = vector.load %arg3[%c0_3, %c0_4] : memref<1x128xf32, #tpu.memory_space<vmem>>, vector<1x128xf32>
    %3 = vector.broadcast %0 : f32 to vector<1x128xf32>
    %4 = arith.mulf %2, %3 : vector<1x128xf32>
    %5 = vector.broadcast %1 : f32 to vector<1x128xf32>
    %6 = arith.addf %4, %5 : vector<1x128xf32>
    %c0_5 = arith.constant 0 : index
    %c0_6 = arith.constant 0 : index
    %7 = vector.load %arg4[%c0_5, %c0_6] : memref<1x128xf32, #tpu.memory_space<vmem>>, vector<1x128xf32>
    tpu.vector_store %arg4[%c0_5, %c0_6], %6 {strides = array<i32>} : memref<1x128xf32, #tpu.memory_space<vmem>>, vector<1x128xf32>,
    return
  }
  func.func @transform_0(%arg0: i32) -> (i32, i32) {
    %c0_i32 = arith.constant 0 : i32
    %c0_i32_0 = arith.constant 0 : i32
    %c0_i32_1 = arith.constant 0 : i32
    return %c0_i32, %c0_i32_0 : i32, i32
  }
  func.func @transform_1(%arg0: i32) -> (i32, i32) {
    %c0_i32 = arith.constant 0 : i32
    %c0_i32_0 = arith.constant 0 : i32
    %c0_i32_1 = arith.constant 0 : i32
    return %c0_i32, %c0_i32_0 : i32, i32
  }
  func.func @transform_2(%arg0: i32) -> (i32, i32) {
    %c0_i32 = arith.constant 0 : i32
    %c0_i32_0 = arith.constant 0 : i32
    return %arg0, %c0_i32 : i32, i32
  }
  func.func @transform_3(%arg0: i32) -> (i32, i32) {
    %c0_i32 = arith.constant 0 : i32
    %c0_i32_0 = arith.constant 0 : i32
    return %arg0, %c0_i32 : i32, i32
  }
}

</mosaic_0001>

<llo_original>
// kernel: tpu_custom_call.1
$region0: #{tpu_custom_call.1}
  #allocation0 [shape = 'u32[]', space=smem, size = 0x4, offset = 0x4, fixed_abs, tag = 'smem constant byte address 0x4 - core index']
  #allocation1 [shape = 'u32[144,128]{1,0:T(1,128)}', space=vmem, size = 0x12000, scoped, tag = 'internal scratch']
  #allocation2 [shape = 'f32[1,1]{1,0:T(1,128)S(6)}', space=smem, size = 0x200, scoped, tag = 'scoped memory for tpu_custom_call.1']
  #allocation3 [shape = 'f32[1,1]{1,0:T(1,128)S(6)}', space=smem, size = 0x200, scoped, tag = 'scoped memory for tpu_custom_call.1']
  %s0 = inlined_call_operand.<no memory space> [shape: f32[1,1], index: 0, kind: input, shape index: {}]
  %s1 = inlined_call_operand.<no memory space> [shape: f32[1,1], index: 1, kind: input, shape index: {}]
  %s2 = inlined_call_operand.vmem [shape: f32[1,128], index: 2, kind: input, shape index: {}]
  %s3 = inlined_call_operand.hbm [shape: f32[1,128], index: 3, kind: output, shape index: {}]
  %s4 = sld [smem:[#allocation0]]
  $region22: #{tpu_custom_call.1} parent=0
    _
  %s6 = ssub.s32 1, %s4
  %s7 = scalar_select 0, %s6, %s4
  %8 = sst [smem:[#allocation2]] %s0
  %9 = sst [smem:[#allocation3]] %s1
  $region1: #{tpu_custom_call.1} parent=0
    #allocation4 [shape = 'u8[512]{0}', space=vmem, size = 0x400, scoped, tag = 'output window, operand 0, single buffered']
    #allocation5 [shape = 's32[1]{0}', space=sflag, size = 0x4, scoped, tag = 'scoped memory for tpu_custom_call.1']
    %10 = vsyncpa [#allocation5], 0
    // Predicated region
    $region2: #{tpu_custom_call.1} parent=1 // pred_check
      _
    $region3: #{tpu_custom_call.1} parent=1 // pred_check_branch
      %12 = sbr.rel (0) target = $region5
    $region4: #{tpu_custom_call.1} parent=1 // pred_region
      _
    $region5: #{tpu_custom_call.1} parent=1 // pred_fallthru
      _
    // Predicated region
    $region6: #{tpu_custom_call.1} parent=1 // pred_check
      _
    $region7: #{tpu_custom_call.1} parent=1 // pred_check_branch
      %14 = sbr.rel (0) target = $region9
    $region8: #{tpu_custom_call.1} parent=1 // pred_region
      _
    $region9: #{tpu_custom_call.1} parent=1 // pred_fallthru
      _
    // Predicated region
    $region10: #{tpu_custom_call.1} parent=1 // pred_check
      _
    $region11: #{tpu_custom_call.1} parent=1 // pred_check_branch
      %16 = sbr.rel (0) target = $region13
    $region12: #{tpu_custom_call.1} parent=1 // pred_region
      _
    $region13: #{tpu_custom_call.1} parent=1 // pred_fallthru
      _
    %s17 = sld [smem:[#allocation2]]
    %s18 = sld [smem:[#allocation3]]
    %v19 = vld [vmem:[%s2] sm:$0x1]
    %v20 = vstv %s17
    %v21 = vmul.f32 %v19, %v20
    %v22 = vstv %s18
    %v23 = vadd.f32 %v21, %v22
    %24 = vst [vmem:[#allocation4] sm:$0x1] %v23
    // Predicated region
    $region14: #{tpu_custom_call.1} parent=1 // pred_check
      _
    $region15: #{tpu_custom_call.1} parent=1 // pred_check_branch
      %26 = sbr.rel (0) target = $region17
    $region16: #{tpu_custom_call.1} parent=1 // pred_region
      %s28 = ssub.s32 16, 16
      %29 = vsyncadd [#allocation5], %s28
      %s31 = sshll.u32 [#allocation4], 4
      %s32 = int_to_ptr.vmem [resolvable:$true] %s31
      %34 = dma.vmem_to_hbm [thread:$0]  %s32, 16, %s3, [#allocation5]
    $region17: #{tpu_custom_call.1} parent=1 // pred_fallthru
      _
    // Predicated region
    $region18: #{tpu_custom_call.1} parent=1 // pred_check
      _
    $region19: #{tpu_custom_call.1} parent=1 // pred_check_branch
      %36 = sbr.rel (0) target = $region21
    $region20: #{tpu_custom_call.1} parent=1 // pred_region
      %37 = dma.done [#allocation5], 16
    $region21: #{tpu_custom_call.1} parent=1 // pred_fallthru
      _
    %38 = vsyncpa [#allocation5], 1

</llo_original>
